<compile_context>
chip_gen: v7x
topology: tpu7x:2x2x1
jax: 0.10.0
libtpu: 0.0.40
codegen_flags: <defaults>
</compile_context>

<pallas_src>
import functools

import numpy as np

import jax
import jax.numpy as jnp
from jax.experimental import pallas as pl
from jax.experimental.pallas import tpu as pltpu

BN_EPS = 1e-5


def _bn_relu(h, gamma, beta):
    """Training-mode BatchNorm1d + ReLU, affine folded into one scale/shift.

    Single-pass statistics: var = E[h^2] - mean^2, clamped at 0 against cancellation.
    Only the final mul+add+relu touch the big (N, T) tile; everything else is (1, T).
    """
    mean = jnp.mean(h, axis=0, keepdims=True)
    mean_sq = jnp.mean(h * h, axis=0, keepdims=True)
    var = jnp.maximum(mean_sq - mean * mean, 0.0)
    scale = gamma * jax.lax.rsqrt(var + BN_EPS)   # (1, T); rsqrt on the EUP
    shift = beta - scale * mean                   # (1, T)
    return jnp.maximum(h * scale + shift, 0.0)


# ----------------------------------------------------------------------------------
# Feature-tiled path: grid over lane-dense output tiles (compute + passthrough mixed).
# ----------------------------------------------------------------------------------
def _residual_tiled_kernel(flag_ref, wblk_ref, xblk_ref, oblk_ref,
                           xb16_ref, xslab_ref, w_ref, gamma_ref, beta_ref,
                           out_ref):
    del wblk_ref, xblk_ref, oblk_ref          # consumed only by the index_maps
    j = pl.program_id(0)
    is_compute = flag_ref[j] == 1

    @pl.when(is_compute)
    def _compute():
        # fc: (N, I)bf16 @ (I, T)bf16 -> f32 accumulation on the MXU. Operands were
        # cast once in the wrapper; no per-step casts here.
        h = jnp.dot(xb16_ref[...], w_ref[...], preferred_element_type=jnp.float32)
        y = _bn_relu(h, gamma_ref[...], beta_ref[...])
        out_ref[...] = y.astype(out_ref.dtype)     # single unmasked lane-dense store

    @pl.when(jnp.logical_not(is_compute))
    def _passthrough():
        # concat([.., x], dim=1): this output tile is a lane-dense slab of x, delivered
        # pre-sliced by the xblk scalar-prefetch index map.
        out_ref[...] = xslab_ref[...].astype(out_ref.dtype)


def _build_schedule(nc, ncp):
    """Interleave passthrough tiles among compute tiles (Bresenham merge).

    Indices are clamped so consecutive steps reuse the resident W / x-slab block
    (no extra DMA is issued by the interleaving).
    """
    flags, wblks, xblks, oblks = [], [], [], []
    ci = pi = 0
    last_w = 0
    last_x = 0
    while ci < nc or pi < ncp:
        take_compute = pi >= ncp or (ci < nc and ci * ncp <= pi * nc)
        if take_compute:
            flags.append(1); wblks.append(ci); xblks.append(last_x); oblks.append(ci)
            last_w = ci
            ci += 1
        else:
            flags.append(0); wblks.append(last_w); xblks.append(pi); oblks.append(nc + pi)
            last_x = pi
            pi += 1
    to = lambda a: jnp.asarray(np.asarray(a, dtype=np.int32))
    return to(flags), to(wblks), to(xblks), to(oblks)


def _vmem_limit_bytes(n, i, tile, out_itemsize):
    resident = 2 * n * i * 2                                   # bf16 x (double-buffered)
    streamed = 2 * (n * tile * 4 + i * tile * 2               # f32 x slab + bf16 W
                    + 2 * 8 * tile * 4                        # gamma + beta (sublane-padded)
                    + n * tile * out_itemsize)                # output tile
    scratch = 8 * n * tile * 4                                 # h + BN temporaries headroom
    est = resident + streamed + scratch
    return int(min(max(2 * est, 8 << 20), 64 << 20))


def _residual_tiled(x, x_bf16, w_bf16, gamma2, beta2, tile):
    N, I = x.shape
    O = w_bf16.shape[1]
    nc, ncp = O // tile, I // tile
    flags, wblks, xblks, oblks = _build_schedule(nc, ncp)
    out_itemsize = jnp.dtype(x.dtype).itemsize

    grid_spec = pltpu.PrefetchScalarGridSpec(
        num_scalar_prefetch=4,
        grid=(nc + ncp,),
        in_specs=[
            pl.BlockSpec((N, I), lambda j, f, wb, xb, ob: (0, 0)),          # bf16 x (resident)
            pl.BlockSpec((N, tile), lambda j, f, wb, xb, ob: (0, xb[j])),   # f32 x slab
            pl.BlockSpec((I, tile), lambda j, f, wb, xb, ob: (0, wb[j])),   # bf16 W column block
            pl.BlockSpec((1, tile), lambda j, f, wb, xb, ob: (0, wb[j])),   # gamma
            pl.BlockSpec((1, tile), lambda j, f, wb, xb, ob: (0, wb[j])),   # beta
        ],
        out_specs=pl.BlockSpec((N, tile), lambda j, f, wb, xb, ob: (0, ob[j])),
    )
    cost = pl.CostEstimate(
        flops=2 * N * I * O,
        transcendentals=O,
        bytes_accessed=N * I * (2 + 4) + I * O * 2 + N * (O + I) * out_itemsize + 8 * O)
    return pl.pallas_call(
        _residual_tiled_kernel,
        out_shape=jax.ShapeDtypeStruct((N, O + I), x.dtype),
        grid_spec=grid_spec,
        compiler_params=pltpu.CompilerParams(
            dimension_semantics=("parallel",),
            vmem_limit_bytes=_vmem_limit_bytes(N, I, tile, out_itemsize)),
        cost_estimate=cost,
    )(flags, wblks, xblks, oblks, x_bf16, x, w_bf16, gamma2, beta2)


# ----------------------------------------------------------------------------------
# Single-block fallback for small / non-128-aligned feature dims.
# ----------------------------------------------------------------------------------
def _residual_single_block_kernel(x_ref, w_ref, gamma_ref, beta_ref, out_ref, *,
                                  split_store):
    x = x_ref[...]
    h = jnp.dot(x.astype(jnp.bfloat16), w_ref[...], preferred_element_type=jnp.float32)
    y = _bn_relu(h, gamma_ref[...], beta_ref[...])
    if split_store:
        o = w_ref.shape[1]
        out_ref[:, :o] = y.astype(out_ref.dtype)     # lane-aligned sub-stores, no
        out_ref[:, o:] = x.astype(out_ref.dtype)     # (N, O+I) concat temporary
    else:
        out_ref[...] = jnp.concatenate(
            [y.astype(out_ref.dtype), x.astype(out_ref.dtype)], axis=1)


def _residual_single_block(x, w_bf16, gamma2, beta2):
    N, I = x.shape
    O = w_bf16.shape[1]
    out_itemsize = jnp.dtype(x.dtype).itemsize
    full = lambda shape: pl.BlockSpec(shape, lambda: (0, 0))
    cost = pl.CostEstimate(
        flops=2 * N * I * O,
        transcendentals=O,
        bytes_accessed=N * I * 4 + I * O * 2 + N * (O + I) * out_itemsize + 8 * O)
    kernel = functools.partial(_residual_single_block_kernel,
                               split_store=(O % 128 == 0))
    return pl.pallas_call(
        kernel,
        out_shape=jax.ShapeDtypeStruct((N, O + I), x.dtype),
        in_specs=[full((N, I)), full((I, O)), full((1, O)), full((1, O))],
        out_specs=full((N, O + I)),
        cost_estimate=cost,
    )(x, w_bf16, gamma2, beta2)


# ----------------------------------------------------------------------------------
# Public wrapper.
# ----------------------------------------------------------------------------------
def _select_tile(i, o):
    """Output-tile lane width: 256 on v6e/v7x (256-wide MXU), 128 on v5e and older."""
    try:
        kind = jax.devices()[0].device_kind.lower()
    except Exception:
        kind = ""
    wide_mxu = ("v6" in kind) or ("v7" in kind)
    if wide_mxu and i % 256 == 0 and o % 256 == 0:
        return 256
    if i % 128 == 0 and o % 128 == 0:
        return 128
    return None  # TODO(synk): pad non-128-aligned dims and route through the tiled path.


def residual_forward(x, w_t, b, gamma, beta):
    """concat([relu(bn(linear(x))), x], axis=1) with training-mode (batch-stat) BN.

    `w_t` is the nn.Linear weight pre-transposed to (in_features, out_features).
    `b` is accepted for API parity but unused: under training-mode BatchNorm the
    per-feature bias cancels exactly against the batch-mean subtraction.
    """
    del b
    N, I = x.shape
    O = w_t.shape[1]
    gamma2 = gamma.reshape(1, O).astype(jnp.float32)
    beta2 = beta.reshape(1, O).astype(jnp.float32)
    w_bf16 = w_t.astype(jnp.bfloat16)            # cast once: halves streamed W bytes
    tile = _select_tile(I, O)
    if tile is not None:
        x_bf16 = x.astype(jnp.bfloat16)          # one-time matmul-LHS cast; f32 x kept
        return _residual_tiled(x, x_bf16, w_bf16, gamma2, beta2, tile)
    return _residual_single_block(x, w_bf16, gamma2, beta2)


# ----------------------------------------------------------------------------------
# References.
# ----------------------------------------------------------------------------------
def residual_reference(x, w_t, b, gamma, beta):
    """Pure-JAX f32 reference mirroring the PyTorch forward (training-mode BN)."""
    h = x @ w_t + b[None, :]
    mean = jnp.mean(h, axis=0, keepdims=True)
    var = jnp.mean((h - mean) ** 2, axis=0, keepdims=True)
    y = gamma[None, :] * (h - mean) * jax.lax.rsqrt(var + BN_EPS) + beta[None, :]
    return jnp.concatenate([jnp.maximum(y, 0.0), x], axis=1)


def residual_reference_bf16(x, w_t, gamma, beta):
    """Exact mirror of the kernel math (bf16 MXU operands, no bias, one-pass BN)."""
    h = jnp.dot(x.astype(jnp.bfloat16), w_t.astype(jnp.bfloat16),
                preferred_element_type=jnp.float32)
    y = _bn_relu(h, gamma[None, :].astype(jnp.float32), beta[None, :].astype(jnp.float32))
    return jnp.concatenate([y, x], axis=1)


if __name__ == "__main__":
    key = jax.random.PRNGKey(0)

    def make_inputs(k, N, I, O):
        kx, kw, kb, kg, kbeta = jax.random.split(k, 5)
        x = jax.random.normal(kx, (N, I), dtype=jnp.float32)
        # PyTorch Linear stores weight as (O, I); we keep the transposed (I, O) layout.
        w_t = jax.random.normal(kw, (I, O), dtype=jnp.float32) * 0.1
        b = jax.random.normal(kb, (O,), dtype=jnp.float32) * 0.1
        gamma = 1.0 + 0.1 * jax.random.normal(kg, (O,), dtype=jnp.float32)
        beta = 0.1 * jax.random.normal(kbeta, (O,), dtype=jnp.float32)
        return x, w_t, b, gamma, beta

    def check(k, N, I, O):
        x, w_t, b, gamma, beta = make_inputs(k, N, I, O)
        out = jax.block_until_ready(residual_forward(x, w_t, b, gamma, beta))
        assert out.shape == (N, O + I)
        assert bool(jnp.array_equal(out[:, O:], x))                        # exact passthrough
        assert bool(jnp.allclose(out, residual_reference_bf16(x, w_t, gamma, beta),
                                 atol=1e-3, rtol=1e-3))                    # mirror of kernel math
        assert bool(jnp.allclose(out, residual_reference(x, w_t, b, gamma, beta),
                                 atol=2e-2, rtol=2e-2))                    # f32 PyTorch semantics

    k1, k2, k3 = jax.random.split(key, 3)
    # 1) Tiled path, 128-lane tiles, interleaved compute/passthrough: Residual(128, 128).
    check(k1, 16, 128, 128)
    # 2) Tiled path; 256-lane tiles on v6e/v7x (128 elsewhere): Residual(256, 256).
    check(k2, 16, 256, 256)
    # 3) Non-128-aligned single-block fallback: Residual(32, 64), batch 8.
    check(k3, 8, 32, 64)

    print("KERNEL_OK")
</pallas_src>

<mosaic_0001>
module attributes {stable_mosaic.version = 11 : i64} {
  func.func @_residual_tiled_kernel(%arg0: i32, %arg1: memref<2xi32, #tpu.memory_space<smem>>, %arg2: memref<2xi32, #tpu.memory_space<smem>>, %arg3: memref<2xi32, #tpu.memory_space<smem>>, %arg4: memref<2xi32, #tpu.memory_space<smem>>, %arg5: memref<16x128xbf16, #tpu.memory_space<vmem>>, %arg6: memref<16x128xf32, #tpu.memory_space<vmem>>, %arg7: memref<128x128xbf16, #tpu.memory_space<vmem>>, %arg8: memref<1x128xf32, #tpu.memory_space<vmem>>, %arg9: memref<1x128xf32, #tpu.memory_space<vmem>>, %arg10: memref<16x128xf32, #tpu.memory_space<vmem>>) attributes {dimension_semantics = [#tpu.dimension_semantics<parallel>], iteration_bounds = array<i64: 2>, scalar_prefetch = 4 : i64, scratch_operands = 0 : i64, tpu.core_type = #tpu.core_type<tc>, window_params = [{pipeline_mode = #tpu.pipeline_mode<synchronous>, transform_indices = @transform_0, window_bounds = array<i64: 16, 128>}, {transform_indices = @transform_1, window_bounds = array<i64: 16, 128>}, {transform_indices = @transform_2, window_bounds = array<i64: 128, 128>}, {transform_indices = @transform_3, window_bounds = array<i64: 1, 128>}, {transform_indices = @transform_4, window_bounds = array<i64: 1, 128>}, {transform_indices = @transform_5, window_bounds = array<i64: 16, 128>}]} {
    %0 = arith.index_cast %arg0 : i32 to index
    %1 = memref.load %arg1[%0] : memref<2xi32, #tpu.memory_space<smem>>
    %c1_i32 = arith.constant 1 : i32
    %2 = arith.cmpi eq, %1, %c1_i32 : i32
    %3 = arith.extui %2 : i1 to i32
    %c0_i32 = arith.constant 0 : i32
    %4 = arith.cmpi ne, %3, %c0_i32 : i32
    scf.if %4 {
      %c0 = arith.constant 0 : index
      %c0_1 = arith.constant 0 : index
      %8 = vector.load %arg5[%c0, %c0_1] : memref<16x128xbf16, #tpu.memory_space<vmem>>, vector<16x128xbf16>
      %c0_2 = arith.constant 0 : index
      %c0_3 = arith.constant 0 : index
      %9 = vector.load %arg7[%c0_2, %c0_3] : memref<128x128xbf16, #tpu.memory_space<vmem>>, vector<128x128xbf16>
      %cst = arith.constant dense<0.000000e+00> : vector<16x128xf32>
      %10 = tpu.matmul %8, %9, %cst {dimension_numbers = #tpu.dot_dimension_numbers<[1], [0], [0], [1], [0, 0, 1, 1], [], []>} : vector<16x128xbf16>, vector<128x128xbf16>, vector<16x128xf32> -> vector<16x128xf32>
      %c0_4 = arith.constant 0 : index
      %c0_5 = arith.constant 0 : index
      %11 = vector.load %arg8[%c0_4, %c0_5] : memref<1x128xf32, #tpu.memory_space<vmem>>, vector<1x128xf32>
      %c0_6 = arith.constant 0 : index
      %c0_7 = arith.constant 0 : index
      %12 = vector.load %arg9[%c0_6, %c0_7] : memref<1x128xf32, #tpu.memory_space<vmem>>, vector<1x128xf32>
      %cst_8 = arith.constant dense<0.000000e+00> : vector<128xf32>
      %13 = vector.multi_reduction <add>, %10, %cst_8 [0] : vector<16x128xf32> to vector<128xf32>
      %14 = vector.shape_cast %13 : vector<128xf32> to vector<1x128xf32>
      %cst_9 = arith.constant 1.600000e+01 : f32
      %15 = vector.broadcast %cst_9 : f32 to vector<1x128xf32>
      %16 = arith.divf %14, %15 : vector<1x128xf32>
      %17 = arith.mulf %10, %10 : vector<16x128xf32>
      %cst_10 = arith.constant dense<0.000000e+00> : vector<128xf32>
      %18 = vector.multi_reduction <add>, %17, %cst_10 [0] : vector<16x128xf32> to vector<128xf32>
      %19 = vector.shape_cast %18 : vector<128xf32> to vector<1x128xf32>
      %cst_11 = arith.constant 1.600000e+01 : f32
      %20 = vector.broadcast %cst_11 : f32 to vector<1x128xf32>
      %21 = arith.divf %19, %20 : vector<1x128xf32>
      %22 = arith.mulf %16, %16 : vector<1x128xf32>
      %23 = arith.subf %21, %22 : vector<1x128xf32>
      %cst_12 = arith.constant 0.000000e+00 : f32
      %24 = vector.broadcast %cst_12 : f32 to vector<1x128xf32>
      %25 = arith.maximumf %23, %24 : vector<1x128xf32>
      %cst_13 = arith.constant 9.99999974E-6 : f32
      %26 = vector.broadcast %cst_13 : f32 to vector<1x128xf32>
      %27 = arith.addf %25, %26 : vector<1x128xf32>
      %28 = math.rsqrt %27 : vector<1x128xf32>
      %29 = arith.mulf %11, %28 : vector<1x128xf32>
      %30 = arith.mulf %29, %16 : vector<1x128xf32>
      %31 = arith.subf %12, %30 : vector<1x128xf32>
      %32 = vector.broadcast %29 : vector<1x128xf32> to vector<16x128xf32>
      %33 = arith.mulf %10, %32 : vector<16x128xf32>
      %34 = vector.broadcast %31 : vector<1x128xf32> to vector<16x128xf32>
      %35 = arith.addf %33, %34 : vector<16x128xf32>
      %cst_14 = arith.constant 0.000000e+00 : f32
      %36 = vector.broadcast %cst_14 : f32 to vector<16x128xf32>
      %37 = arith.maximumf %35, %36 : vector<16x128xf32>
      %c0_15 = arith.constant 0 : index
      %c0_16 = arith.constant 0 : index
      %38 = vector.load %arg10[%c0_15, %c0_16] : memref<16x128xf32, #tpu.memory_space<vmem>>, vector<16x128xf32>
      tpu.vector_store %arg10[%c0_15, %c0_16], %37 {strides = array<i32>} : memref<16x128xf32, #tpu.memory_space<vmem>>, vector<16x128xf32>,
    } else {
    }
    %true = arith.constant true
    %5 = arith.xori %2, %true : i1
    %6 = arith.extui %5 : i1 to i32
    %c0_i32_0 = arith.constant 0 : i32
    %7 = arith.cmpi ne, %6, %c0_i32_0 : i32
    scf.if %7 {
      %c0 = arith.constant 0 : index
      %c0_1 = arith.constant 0 : index
      %8 = vector.load %arg6[%c0, %c0_1] : memref<16x128xf32, #tpu.memory_space<vmem>>, vector<16x128xf32>
      %c0_2 = arith.constant 0 : index
      %c0_3 = arith.constant 0 : index
      %9 = vector.load %arg10[%c0_2, %c0_3] : memref<16x128xf32, #tpu.memory_space<vmem>>, vector<16x128xf32>
      tpu.vector_store %arg10[%c0_2, %c0_3], %8 {strides = array<i32>} : memref<16x128xf32, #tpu.memory_space<vmem>>, vector<16x128xf32>,
    } else {
    }
    return
  }
  func.func @transform_0(%arg0: i32, %arg1: memref<2xi32, #tpu.memory_space<smem>>, %arg2: memref<2xi32, #tpu.memory_space<smem>>, %arg3: memref<2xi32, #tpu.memory_space<smem>>, %arg4: memref<2xi32, #tpu.memory_space<smem>>) -> (i32, i32) {
    %c0_i32 = arith.constant 0 : i32
    %c0_i32_0 = arith.constant 0 : i32
    %c0_i32_1 = arith.constant 0 : i32
    return %c0_i32, %c0_i32_0 : i32, i32
  }
  func.func @transform_1(%arg0: i32, %arg1: memref<2xi32, #tpu.memory_space<smem>>, %arg2: memref<2xi32, #tpu.memory_space<smem>>, %arg3: memref<2xi32, #tpu.memory_space<smem>>, %arg4: memref<2xi32, #tpu.memory_space<smem>>) -> (i32, i32) {
    %0 = arith.index_cast %arg0 : i32 to index
    %1 = memref.load %arg3[%0] : memref<2xi32, #tpu.memory_space<smem>>
    %c0_i32 = arith.constant 0 : i32
    %c0_i32_0 = arith.constant 0 : i32
    return %c0_i32, %1 : i32, i32
  }
  func.func @transform_2(%arg0: i32, %arg1: memref<2xi32, #tpu.memory_space<smem>>, %arg2: memref<2xi32, #tpu.memory_space<smem>>, %arg3: memref<2xi32, #tpu.memory_space<smem>>, %arg4: memref<2xi32, #tpu.memory_space<smem>>) -> (i32, i32) {
    %0 = arith.index_cast %arg0 : i32 to index
    %1 = memref.load %arg2[%0] : memref<2xi32, #tpu.memory_space<smem>>
    %c0_i32 = arith.constant 0 : i32
    %c0_i32_0 = arith.constant 0 : i32
    return %c0_i32, %1 : i32, i32
  }
  func.func @transform_3(%arg0: i32, %arg1: memref<2xi32, #tpu.memory_space<smem>>, %arg2: memref<2xi32, #tpu.memory_space<smem>>, %arg3: memref<2xi32, #tpu.memory_space<smem>>, %arg4: memref<2xi32, #tpu.memory_space<smem>>) -> (i32, i32) {
    %0 = arith.index_cast %arg0 : i32 to index
    %1 = memref.load %arg2[%0] : memref<2xi32, #tpu.memory_space<smem>>
    %c0_i32 = arith.constant 0 : i32
    %c0_i32_0 = arith.constant 0 : i32
    return %c0_i32, %1 : i32, i32
  }
  func.func @transform_4(%arg0: i32, %arg1: memref<2xi32, #tpu.memory_space<smem>>, %arg2: memref<2xi32, #tpu.memory_space<smem>>, %arg3: memref<2xi32, #tpu.memory_space<smem>>, %arg4: memref<2xi32, #tpu.memory_space<smem>>) -> (i32, i32) {
    %0 = arith.index_cast %arg0 : i32 to index
    %1 = memref.load %arg2[%0] : memref<2xi32, #tpu.memory_space<smem>>
    %c0_i32 = arith.constant 0 : i32
    %c0_i32_0 = arith.constant 0 : i32
    return %c0_i32, %1 : i32, i32
  }
  func.func @transform_5(%arg0: i32, %arg1: memref<2xi32, #tpu.memory_space<smem>>, %arg2: memref<2xi32, #tpu.memory_space<smem>>, %arg3: memref<2xi32, #tpu.memory_space<smem>>, %arg4: memref<2xi32, #tpu.memory_space<smem>>) -> (i32, i32) {
    %0 = arith.index_cast %arg0 : i32 to index
    %1 = memref.load %arg4[%0] : memref<2xi32, #tpu.memory_space<smem>>
    %c0_i32 = arith.constant 0 : i32
    %c0_i32_0 = arith.constant 0 : i32
    return %c0_i32, %1 : i32, i32
  }
}

</mosaic_0001>

<llo_original>
// kernel: tpu_custom_call.1
$region0: #{tpu_custom_call.1}
  #allocation0 [shape = 'u32[]', space=smem, size = 0x4, offset = 0x4, fixed_abs, tag = 'smem constant byte address 0x4 - core index']
  #allocation1 [shape = 'u32[144,128]{1,0:T(1,128)}', space=vmem, size = 0x12000, scoped, tag = 'internal scratch']
  #allocation2 [shape = 's32[1]{0}', space=sflag, size = 0x4, scoped, tag = 'scoped memory for tpu_custom_call.1']
  #allocation3 [shape = 'u8[512]{0}', space=smem, size = 0x200, scoped, tag = 'prefetched SMEM operand 0']
  #allocation4 [shape = 'u8[512]{0}', space=smem, size = 0x200, scoped, tag = 'prefetched SMEM operand 1']
  #allocation5 [shape = 'u8[512]{0}', space=smem, size = 0x200, scoped, tag = 'prefetched SMEM operand 2']
  #allocation6 [shape = 'u8[512]{0}', space=smem, size = 0x200, scoped, tag = 'prefetched SMEM operand 3']
  %s0 = inlined_call_operand.hbm [shape: s32[2], index: 0, kind: input, shape index: {}]
  %s1 = inlined_call_operand.vmem [shape: s32[2], index: 1, kind: input, shape index: {}]
  %s2 = inlined_call_operand.vmem [shape: s32[2], index: 2, kind: input, shape index: {}]
  %s3 = inlined_call_operand.hbm [shape: s32[2], index: 3, kind: input, shape index: {}]
  %s4 = inlined_call_operand.hbm [shape: bf16[16,128], index: 4, kind: input, shape index: {}]
  %s5 = inlined_call_operand.vmem [shape: f32[16,128], index: 5, kind: input, shape index: {}]
  %s6 = inlined_call_operand.hbm [shape: bf16[128,128], index: 6, kind: input, shape index: {}]
  %s7 = inlined_call_operand.vmem [shape: f32[1,128], index: 7, kind: input, shape index: {}]
  %s8 = inlined_call_operand.vmem [shape: f32[1,128], index: 8, kind: input, shape index: {}]
  %s9 = inlined_call_operand.hbm [shape: f32[16,256], index: 9, kind: output, shape index: {}]
  %s10 = sld [smem:[#allocation0]]
  $region69: #{tpu_custom_call.1} parent=0
    _
  %s12 = ssub.s32 1, %s10
  %s13 = scalar_select 0, %s12, %s10
  %15 = dma.hbm_to_smem %s0, 16, [#allocation3], [#allocation2]
  %s16 = sshll.u32 %s1, 4
  %s17 = int_to_ptr.vmem [resolvable:$true] %s16
  %19 = dma.vmem_to_smem %s17, 16, [#allocation4], [#allocation2]
  %s20 = sshll.u32 %s2, 4
  %s21 = int_to_ptr.vmem [resolvable:$true] %s20
  %23 = dma.vmem_to_smem %s21, 16, [#allocation5], [#allocation2]
  %25 = dma.hbm_to_smem %s3, 16, [#allocation6], [#allocation2]
  %26 = dma.done [#allocation2], 64
  %27 = sfence
  $region1: #{tpu_custom_call.1} parent=0
    #allocation7 [shape = 'u8[4096]{0}', space=vmem, size = 0x1000, scoped, tag = 'input window, operand 4, single buffered']
    #allocation8 [shape = 's32[2]{0}', space=sflag, size = 0x8, scoped, tag = 'scoped memory for tpu_custom_call.1']
    #allocation9 [shape = 's32[2]{0}', space=sflag, size = 0x8, scoped, tag = 'scoped memory for tpu_custom_call.1']
    #allocation10 [shape = 'u8[65536]{0}', space=vmem, size = 0x10000, scoped, tag = 'input window, operand 6']
    #allocation11 [shape = 's32[2]{0}', space=sflag, size = 0x8, scoped, tag = 'scoped memory for tpu_custom_call.1']
    #allocation12 [shape = 'u8[16384]{0}', space=vmem, size = 0x4000, scoped, tag = 'output window, operand 0']
    %28 = vsyncpa [#allocation8], 0
    %29 = vsyncpa [#allocation11], 0
    %s30 = scalar_lea.sflag [#allocation11], 1
    %31 = vsyncpa %s30, 0
    %32 = vsyncpa [#allocation9], 0
    %s33 = scalar_lea.sflag [#allocation9], 1
    %34 = vsyncpa %s33, 0
    loop: start=0, step=1, limit=4
    $region2: #{tpu_custom_call.1} parent=1 // loop_pre_header
      _
    $region3: #{tpu_custom_call.1} parent=1 // loop_header
      %s36 = sphi 0, %s40
      %p37 = scmp.ge.s32.totalorder %s36, 4
      %s44 = sphi 0, %s44
      %s46 = sphi 0, %s44
      %s47 = sphi 0, %s46
      %s61 = sphi 0, %s47
      %s69 = sphi 0, %s71
      %s72 = sphi 0, %s69
      %s73 = sphi 0, %s72
      %s89 = sphi 0, %s73
      %s97 = sphi 0, %s99
      %s100 = sphi 0, %s97
      %s101 = sphi 0, %s100
      %s117 = sphi 0, %s101
      %s125 = sphi 0, %s127
      %s128 = sphi 0, %s125
      %s129 = sphi 0, %s128
      %s145 = sphi 0, %s129
      %s153 = sphi 0, %s155
      %s156 = sphi 0, %s153
      %s157 = sphi 0, %s156
      %s173 = sphi 0, %s157
      %s181 = sphi 0, %s183
      %s184 = sphi 0, %s181
      %s185 = sphi 0, %s184
      %s201 = sphi 0, %s185
    $region4: #{tpu_custom_call.1} parent=1 // loop_header_branch
      %39 = sbr.rel (%p37) target = $region8
    $region5: #{tpu_custom_call.1} parent=1 // loop_body
      %s41 = ssub.s32 %s36, 1
      %s42 = ssub.s32 %s36, 2
      %s43 = sadd.s32 %s36, 1
      %s45 = sadd.s32 %s44, 1
      %p48 = scmp.eq.s32.totalorder %s36, 1
      %p49 = scmp.ne.s32.totalorder %s44, %s46
      %p50 = scmp.eq.s32.totalorder %s36, 0
      %p51 = por %p49, %p50
      %p52 = scmp.ne.s32.totalorder %s44, %s46
      %p53 = scmp.eq.s32.totalorder %s41, 1
      %p54 = por %p52, %p53
      %p55 = scmp.ne.s32.totalorder %s46, %s47
      %p56 = scmp.eq.s32.totalorder %s41, 0
      %p57 = por %p55, %p56
      %p58 = scmp.ne.s32.totalorder %s46, %s47
      %p59 = scmp.eq.s32.totalorder %s42, 1
      %p60 = por %p58, %p59
      %p62 = scmp.ne.s32.totalorder %s47, %s61
      %p63 = scmp.eq.s32.totalorder %s42, 0
      %p64 = por %p62, %p63
      %s65 = sld [smem:[#allocation5 + %s36]]
      %s66 = sld [smem:[#allocation5 + %s43]]
      %s67 = ssub.s32 %s65, %s66
      %p68 = scmp.eq.s32.totalorder %s67, 0
      %s70 = sadd.s32 %s69, 1
      %s71 = scalar_select %p68, %s69, %s70
      %p74 = pneg %p68
      %p75 = scmp.eq.s32.totalorder %s36, 1
      %p76 = por %p74, %p75
      %p77 = scmp.ne.s32.totalorder %s69, %s72
      %p78 = scmp.eq.s32.totalorder %s36, 0
      %p79 = por %p77, %p78
      %p80 = scmp.ne.s32.totalorder %s69, %s72
      %p81 = scmp.eq.s32.totalorder %s41, 1
      %p82 = por %p80, %p81
      %p83 = scmp.ne.s32.totalorder %s72, %s73
      %p84 = scmp.eq.s32.totalorder %s41, 0
      %p85 = por %p83, %p84
      %p86 = scmp.ne.s32.totalorder %s72, %s73
      %p87 = scmp.eq.s32.totalorder %s42, 1
      %p88 = por %p86, %p87
      %p90 = scmp.ne.s32.totalorder %s73, %s89
      %p91 = scmp.eq.s32.totalorder %s42, 0
      %p92 = por %p90, %p91
      %s93 = sld [smem:[#allocation4 + %s36]]
      %s94 = sld [smem:[#allocation4 + %s43]]
      %s95 = ssub.s32 %s93, %s94
      %p96 = scmp.eq.s32.totalorder %s95, 0
      %s98 = sadd.s32 %s97, 1
      %s99 = scalar_select %p96, %s97, %s98
      %p102 = pneg %p96
      %p103 = scmp.eq.s32.totalorder %s36, 1
      %p104 = por %p102, %p103
      %p105 = scmp.ne.s32.totalorder %s97, %s100
      %p106 = scmp.eq.s32.totalorder %s36, 0
      %p107 = por %p105, %p106
      %p108 = scmp.ne.s32.totalorder %s97, %s100
      %p109 = scmp.eq.s32.totalorder %s41, 1
      %p110 = por %p108, %p109
      %p111 = scmp.ne.s32.totalorder %s100, %s101
      %p112 = scmp.eq.s32.totalorder %s41, 0
      %p113 = por %p111, %p112
      %p114 = scmp.ne.s32.totalorder %s100, %s101
      %p115 = scmp.eq.s32.totalorder %s42, 1
      %p116 = por %p114, %p115
      %p118 = scmp.ne.s32.totalorder %s101, %s117
      %p119 = scmp.eq.s32.totalorder %s42, 0
      %p120 = por %p118, %p119
      %s121 = sld [smem:[#allocation4 + %s36]]
      %s122 = sld [smem:[#allocation4 + %s43]]
      %s123 = ssub.s32 %s121, %s122
      %p124 = scmp.eq.s32.totalorder %s123, 0
      %s126 = sadd.s32 %s125, 1
      %s127 = scalar_select %p124, %s125, %s126
      %p130 = pneg %p124
      %p131 = scmp.eq.s32.totalorder %s36, 1
      %p132 = por %p130, %p131
      %p133 = scmp.ne.s32.totalorder %s125, %s128
      %p134 = scmp.eq.s32.totalorder %s36, 0
      %p135 = por %p133, %p134
      %p136 = scmp.ne.s32.totalorder %s125, %s128
      %p137 = scmp.eq.s32.totalorder %s41, 1
      %p138 = por %p136, %p137
      %p139 = scmp.ne.s32.totalorder %s128, %s129
      %p140 = scmp.eq.s32.totalorder %s41, 0
      %p141 = por %p139, %p140
      %p142 = scmp.ne.s32.totalorder %s128, %s129
      %p143 = scmp.eq.s32.totalorder %s42, 1
      %p144 = por %p142, %p143
      %p146 = scmp.ne.s32.totalorder %s129, %s145
      %p147 = scmp.eq.s32.totalorder %s42, 0
      %p148 = por %p146, %p147
      %s149 = sld [smem:[#allocation4 + %s36]]
      %s150 = sld [smem:[#allocation4 + %s43]]
      %s151 = ssub.s32 %s149, %s150
      %p152 = scmp.eq.s32.totalorder %s151, 0
      %s154 = sadd.s32 %s153, 1
      %s155 = scalar_select %p152, %s153, %s154
      %p158 = pneg %p152
      %p159 = scmp.eq.s32.totalorder %s36, 1
      %p160 = por %p158, %p159
      %p161 = scmp.ne.s32.totalorder %s153, %s156
      %p162 = scmp.eq.s32.totalorder %s36, 0
      %p163 = por %p161, %p162
      %p164 = scmp.ne.s32.totalorder %s153, %s156
      %p165 = scmp.eq.s32.totalorder %s41, 1
      %p166 = por %p164, %p165
      %p167 = scmp.ne.s32.totalorder %s156, %s157
      %p168 = scmp.eq.s32.totalorder %s41, 0
      %p169 = por %p167, %p168
      %p170 = scmp.ne.s32.totalorder %s156, %s157
      %p171 = scmp.eq.s32.totalorder %s42, 1
      %p172 = por %p170, %p171
      %p174 = scmp.ne.s32.totalorder %s157, %s173
      %p175 = scmp.eq.s32.totalorder %s42, 0
      %p176 = por %p174, %p175
      %s177 = sld [smem:[#allocation6 + %s36]]
      %s178 = sld [smem:[#allocation6 + %s43]]
      %s179 = ssub.s32 %s177, %s178
      %p180 = scmp.eq.s32.totalorder %s179, 0
      %s182 = sadd.s32 %s181, 1
      %s183 = scalar_select %p180, %s181, %s182
      %p186 = pneg %p180
      %p187 = scmp.eq.s32.totalorder %s36, 1
      %p188 = por %p186, %p187
      %p189 = scmp.ne.s32.totalorder %s181, %s184
      %p190 = scmp.eq.s32.totalorder %s36, 0
      %p191 = por %p189, %p190
      %p192 = scmp.ne.s32.totalorder %s181, %s184
      %p193 = scmp.eq.s32.totalorder %s41, 1
      %p194 = por %p192, %p193
      %p195 = scmp.ne.s32.totalorder %s184, %s185
      %p196 = scmp.eq.s32.totalorder %s41, 0
      %p197 = por %p195, %p196
      %p198 = scmp.ne.s32.totalorder %s184, %s185
      %p199 = scmp.eq.s32.totalorder %s42, 1
      %p200 = por %p198, %p199
      %p202 = scmp.ne.s32.totalorder %s185, %s201
      %p203 = scmp.eq.s32.totalorder %s42, 0
      %p204 = por %p202, %p203
      %p205 = scmp.le.s32.totalorder 1, %s36
      %p206 = scmp.lt.s32.totalorder %s36, 3
      %p207 = pnand %p205, %p206
      %p208 = pneg %p207
      // Predicated region
      $region9: #{tpu_custom_call.1} parent=5 // pred_check
        _
      $region10: #{tpu_custom_call.1} parent=5 // pred_check_branch
        %210 = sbr.rel (%p207) target = $region12
      $region11: #{tpu_custom_call.1} parent=5 // pred_region
        %s211 = ssub.s32 %s36, 1
        // Predicated region
        $region13: #{tpu_custom_call.1} parent=11 // pred_check
          %p212 = pneg %p57
        $region14: #{tpu_custom_call.1} parent=11 // pred_check_branch
          %214 = sbr.rel (%p212) target = $region16
        $region15: #{tpu_custom_call.1} parent=11 // pred_region
          %s216 = ssub.s32 128, 128
          %217 = vsyncadd [#allocation8], %s216
          %s218 = sshll.u32 [#allocation7], 4
          %s219 = int_to_ptr.vmem [resolvable:$true] %s218
          %224 = dma.hbm_to_vmem [thread:$0]  %s4, 128, %s219, [#allocation8], 64, 64, 4
        $region16: #{tpu_custom_call.1} parent=11 // pred_fallthru
          _
      $region12: #{tpu_custom_call.1} parent=5 // pred_fallthru
        _
      %p225 = scmp.lt.s32.totalorder %s36, 2
      // Predicated region
      $region17: #{tpu_custom_call.1} parent=5 // pred_check
        %p226 = pneg %p225
      $region18: #{tpu_custom_call.1} parent=5 // pred_check_branch
        %228 = sbr.rel (%p226) target = $region20
      $region19: #{tpu_custom_call.1} parent=5 // pred_region
        // Predicated region
        $region21: #{tpu_custom_call.1} parent=19 // pred_check
          %p229 = pneg %p79
        $region22: #{tpu_custom_call.1} parent=19 // pred_check_branch
          %231 = sbr.rel (%p229) target = $region24
        $region23: #{tpu_custom_call.1} parent=19 // pred_region
          %s232 = sld [smem:[#allocation5 + %s36]]
          %p233 = scmp.lt.s32.totalorder %s232, 0
          %s234 = scalar_select %p233, %s232, 0
          %s235 = smul.addr %s234, 8
          %s236 = scalar_lea.vmem %s5, %s235
          %s237 = sld [smem:[#allocation5 + %s36]]
        $region24: #{tpu_custom_call.1} parent=19 // pred_fallthru
          _
        // Predicated region
        $region25: #{tpu_custom_call.1} parent=19 // pred_check
          %p238 = pneg %p107
        $region26: #{tpu_custom_call.1} parent=19 // pred_check_branch
          %240 = sbr.rel (%p238) target = $region28
        $region27: #{tpu_custom_call.1} parent=19 // pred_region
          %s241 = sand.u32 %s97, 1
          %s242 = scalar_lea.sflag [#allocation11], %s241
          %s243 = sand.u32 %s97, 1
          %s244 = smul.addr %s243, 64
          %s245 = scalar_lea.vmem [#allocation10], %s244
          %s246 = sld [smem:[#allocation4 + %s36]]
          %s248 = ssub.s32 1024, 1024
          %249 = vsyncadd %s242, %s248
          %s250 = smul.addr %s246, 64
          %s251 = scalar_lea.hbm %s6, %s250
          %s252 = sshll.u32 %s245, 4
          %s253 = int_to_ptr.vmem [resolvable:$true] %s252
          %258 = dma.hbm_to_vmem [thread:$0]  %s251, 1024, %s253, %s242, 64, 64, 4
        $region28: #{tpu_custom_call.1} parent=19 // pred_fallthru
          _
        // Predicated region
        $region29: #{tpu_custom_call.1} parent=19 // pred_check
          %p259 = pneg %p135
        $region30: #{tpu_custom_call.1} parent=19 // pred_check_branch
          %261 = sbr.rel (%p259) target = $region32
        $region31: #{tpu_custom_call.1} parent=19 // pred_region
          %s262 = sld [smem:[#allocation4 + %s36]]
          %p263 = scmp.lt.s32.totalorder %s262, 0
          %s264 = scalar_select %p263, %s262, 0
          %s265 = scalar_lea.vmem %s7, %s264
          %s266 = sld [smem:[#allocation4 + %s36]]
        $region32: #{tpu_custom_call.1} parent=19 // pred_fallthru
          _
        // Predicated region
        $region33: #{tpu_custom_call.1} parent=19 // pred_check
          %p267 = pneg %p163
        $region34: #{tpu_custom_call.1} parent=19 // pred_check_branch
          %269 = sbr.rel (%p267) target = $region36
        $region35: #{tpu_custom_call.1} parent=19 // pred_region
          %s270 = sld [smem:[#allocation4 + %s36]]
          %p271 = scmp.lt.s32.totalorder %s270, 0
          %s272 = scalar_select %p271, %s270, 0
          %s273 = scalar_lea.vmem %s8, %s272
          %s274 = sld [smem:[#allocation4 + %s36]]
        $region36: #{tpu_custom_call.1} parent=19 // pred_fallthru
          _
      $region20: #{tpu_custom_call.1} parent=5 // pred_fallthru
        _
      %p275 = scmp.le.s32.totalorder 1, %s36
      %p276 = scmp.lt.s32.totalorder %s36, 3
      %p277 = pnand %p275, %p276
      %p278 = pneg %p277
      // Predicated region
      $region37: #{tpu_custom_call.1} parent=5 // pred_check
        _
      $region38: #{tpu_custom_call.1} parent=5 // pred_check_branch
        %280 = sbr.rel (%p277) target = $region40
      $region39: #{tpu_custom_call.1} parent=5 // pred_region
        %s281 = ssub.s32 %s36, 1
        // Predicated region
        $region41: #{tpu_custom_call.1} parent=39 // pred_check
          %p282 = pneg %p57
        $region42: #{tpu_custom_call.1} parent=39 // pred_check_branch
          %284 = sbr.rel (%p282) target = $region44
        $region43: #{tpu_custom_call.1} parent=39 // pred_region
          %285 = dma.done [#allocation8], 128
        $region44: #{tpu_custom_call.1} parent=39 // pred_fallthru
          _
        %s286 = sand.u32 %s100, 1
        %s287 = scalar_lea.sflag [#allocation11], %s286
        %s288 = sand.u32 %s100, 1
        %s289 = smul.addr %s288, 64
        %s290 = scalar_lea.vmem [#allocation10], %s289
        // Predicated region
        $region45: #{tpu_custom_call.1} parent=39 // pred_check
          %p291 = pneg %p113
        $region46: #{tpu_custom_call.1} parent=39 // pred_check_branch
          %293 = sbr.rel (%p291) target = $region48
        $region47: #{tpu_custom_call.1} parent=39 // pred_region
          %294 = dma.done %s287, 1024
        $region48: #{tpu_custom_call.1} parent=39 // pred_fallthru
          _
        %p295 = pneg %p57
        %p296 = pneg %p54
        %s297 = sld [smem:[#allocation5 + %s41]]
        %p298 = scmp.lt.s32.totalorder %s297, 0
        %s299 = scalar_select %p298, %s297, 0
        %s300 = smul.addr %s299, 8
        %s301 = scalar_lea.vmem %s5, %s300
        %p302 = pneg %p85
        %p303 = pneg %p82
        %s304 = sand.u32 %s100, 1
        %s305 = scalar_lea.sflag [#allocation11], %s304
        %s306 = sand.u32 %s100, 1
        %s307 = smul.addr %s306, 64
        %s308 = scalar_lea.vmem [#allocation10], %s307
        %p309 = pneg %p113
        %p310 = pneg %p110
        %s311 = sld [smem:[#allocation4 + %s41]]
        %p312 = scmp.lt.s32.totalorder %s311, 0
        %s313 = scalar_select %p312, %s311, 0
        %s314 = scalar_lea.vmem %s7, %s313
        %p315 = pneg %p141
        %p316 = pneg %p138
        %s317 = sld [smem:[#allocation4 + %s41]]
        %p318 = scmp.lt.s32.totalorder %s317, 0
        %s319 = scalar_select %p318, %s317, 0
        %s320 = scalar_lea.vmem %s8, %s319
        %p321 = pneg %p169
        %p322 = pneg %p166
        %p323 = pneg %p197
        %p324 = pneg %p194
        %s325 = sand.u32 %s184, 1
        %s326 = scalar_lea.sflag [#allocation9], %s325
        %s327 = sand.u32 %s184, 1
        %s328 = smul.addr %s327, 16
        %s329 = scalar_lea.vmem [#allocation12], %s328
        %s330 = sld [smem:[#allocation5 + %s41]]
        %p331 = scmp.lt.s32.totalorder %s330, 0
        %s332 = scalar_select %p331, %s330, 0
        %s333 = smul.addr %s332, 8
        %s334 = scalar_lea.vmem %s5, %s333
        %s335 = sld [smem:[#allocation5 + %s41]]
        %s336 = sld [smem:[#allocation4 + %s41]]
        %s337 = sld [smem:[#allocation4 + %s41]]
        %p338 = scmp.lt.s32.totalorder %s337, 0
        %s339 = scalar_select %p338, %s337, 0
        %s340 = scalar_lea.vmem %s7, %s339
        %s341 = sld [smem:[#allocation4 + %s41]]
        %s342 = sld [smem:[#allocation4 + %s41]]
        %p343 = scmp.lt.s32.totalorder %s342, 0
        %s344 = scalar_select %p343, %s342, 0
        %s345 = scalar_lea.vmem %s8, %s344
        %s346 = sld [smem:[#allocation4 + %s41]]
        %s347 = sld [smem:[#allocation6 + %s41]]
        %s349 = sld [smem:[#allocation3 + %s41]]
        %p350 = scmp.eq.s32.totalorder %s349, 1
        // Predicated region
        $region49: #{tpu_custom_call.1} parent=39 // pred_check
          %p351 = pneg %p350
        $region50: #{tpu_custom_call.1} parent=39 // pred_check_branch
          %353 = sbr.rel (%p351) target = $region52
        $region51: #{tpu_custom_call.1} parent=39 // pred_region
          %v354 = vld [vmem:[#allocation7] sm:$0xf]
          %v355 = vld [vmem:[#allocation7 + $0x4] sm:$0xf]
          %v356 = vld [vmem:[%s290] sm:$0xf]
          %v357 = vld [vmem:[%s290 + $0x4] sm:$0xf]
          %v358 = vld [vmem:[%s290 + $0x8] sm:$0xf]
          %v359 = vld [vmem:[%s290 + $0xc] sm:$0xf]
          %v360 = vld [vmem:[%s290 + $0x10] sm:$0xf]
          %v361 = vld [vmem:[%s290 + $0x14] sm:$0xf]
          %v362 = vld [vmem:[%s290 + $0x18] sm:$0xf]
          %v363 = vld [vmem:[%s290 + $0x1c] sm:$0xf]
          %v364 = vld [vmem:[%s290 + $0x20] sm:$0xf]
          %v365 = vld [vmem:[%s290 + $0x24] sm:$0xf]
          %v366 = vld [vmem:[%s290 + $0x28] sm:$0xf]
          %v367 = vld [vmem:[%s290 + $0x2c] sm:$0xf]
          %v368 = vld [vmem:[%s290 + $0x30] sm:$0xf]
          %v369 = vld [vmem:[%s290 + $0x34] sm:$0xf]
          %v370 = vld [vmem:[%s290 + $0x38] sm:$0xf]
          %v371 = vld [vmem:[%s290 + $0x3c] sm:$0xf]
          %v374 = vunpack.c.l.b16 %v354
          %v375 = vunpack.c.l.b16 %v355
          %v376 = vpack.c.b16 %v375, %v374
          %v394 = vunpack.c.l.b16 %v356
          %v395 = vunpack.c.l.b16 %v357
          %v396 = vunpack.c.l.b16 %v358
          %v397 = vunpack.c.l.b16 %v359
          %v398 = vunpack.c.l.b16 %v360
          %v399 = vunpack.c.l.b16 %v361
          %v400 = vunpack.c.l.b16 %v362
          %v401 = vunpack.c.l.b16 %v363
          %v402 = vunpack.c.l.b16 %v364
          %v403 = vunpack.c.l.b16 %v365
          %v404 = vunpack.c.l.b16 %v366
          %v405 = vunpack.c.l.b16 %v367
          %v406 = vunpack.c.l.b16 %v368
          %v407 = vunpack.c.l.b16 %v369
          %v408 = vunpack.c.l.b16 %v370
          %v409 = vunpack.c.l.b16 %v371
          %v410 = vpack.c.b16 %v395, %v394
          %v411 = vpack.c.b16 %v397, %v396
          %v412 = vpack.c.b16 %v399, %v398
          %v413 = vpack.c.b16 %v401, %v400
          %v414 = vpack.c.b16 %v403, %v402
          %v415 = vpack.c.b16 %v405, %v404
          %v416 = vpack.c.b16 %v407, %v406
          %v417 = vpack.c.b16 %v409, %v408
          %426 = vmatprep.subr.bf16.mxu0 0
          %427 = vmatpush1.bf16.msra.mxu0 %v410
          %428 = vmatprep.subr.bf16.mxu0 0
          %429 = vmatpush1.bf16.msra.mxu0 %v411
          %430 = vmatprep.subr.bf16.mxu0 0
          %431 = vmatpush1.bf16.msra.mxu0 %v412
          %432 = vmatprep.subr.bf16.mxu0 0
          %433 = vmatpush1.bf16.msra.mxu0 %v413
          %434 = vmatprep.subr.bf16.mxu0 0
          %435 = vmatpush1.bf16.msra.mxu0 %v414
          %436 = vmatprep.subr.bf16.mxu0 0
          %437 = vmatpush1.bf16.msra.mxu0 %v415
          %438 = vmatprep.subr.bf16.mxu0 0
          %439 = vmatpush1.bf16.msra.mxu0 %v416
          %440 = vmatprep.subr.bf16.mxu0 0
          %441 = vmatpush1.bf16.msra.mxu0 %v417
          %442 = vmatprep.subr.bf16.mxu0 0
          %443 = vmatpush1.bf16.msra.mxu0 0
          %444 = vmatprep.subr.bf16.mxu0 0
          %445 = vmatpush1.bf16.msra.mxu0 0
          %446 = vmatprep.subr.bf16.mxu0 0
          %447 = vmatpush1.bf16.msra.mxu0 0
          %448 = vmatprep.subr.bf16.mxu0 0
          %449 = vmatpush1.bf16.msra.mxu0 0
          %450 = vmatprep.subr.bf16.mxu0 0
          %451 = vmatpush1.bf16.msra.mxu0 0
          %452 = vmatprep.subr.bf16.mxu0 0
          %453 = vmatpush1.bf16.msra.mxu0 0
          %454 = vmatprep.subr.bf16.mxu0 0
          %455 = vmatpush1.bf16.msra.mxu0 0
          %456 = vmatprep.subr.bf16.mxu0 0
          %457 = vmatpush1.bf16.msra.mxu0 0
          %458 = vmatprep.mubr.bf16.mxu0 0
          %459 = vmatmul.mubr.bf16.gmra.mrb[0].mxu0 %v376
          %v460 = vpop.f32.mrb[0].mxu0
          %v461 = vadd.f32 0.0, %v460
          %v462 = vpop.f32.mrb[0].mxu0
          %v463 = vpop.f32.mrb[0].mxu0
          %v464 = vadd.f32 0.0, %v463
          %v465 = vpop.f32.mrb[0].mxu0
          %466 = vdwg.mxu0
          %v467 = vld [vmem:[%s340] sm:$0x1]
          %v468 = vld [vmem:[%s345] sm:$0x1]
          %v469 = vadd.f32 %v461, %v464
          %v470 = vrot.slane %v469, 4
          %v471 = vadd.f32 %v469, %v470
          %v472 = vrot.slane %v471, 2
          %v473 = vadd.f32 %v471, %v472
          %v474 = vrot.slane %v473, 1
          %v475 = vadd.f32 %v473, %v474
          %v476 = vrcp.pop 16.0
          %v477 = vmul.f32 %v475, %v476
          %v478 = vmul.f32 %v461, %v461
          %v479 = vmul.f32 %v464, %v464
          %v480 = vadd.f32 %v478, %v479
          %v481 = vrot.slane %v480, 4
          %v482 = vadd.f32 %v480, %v481
          %v483 = vrot.slane %v482, 2
          %v484 = vadd.f32 %v482, %v483
          %v485 = vrot.slane %v484, 1
          %v486 = vadd.f32 %v484, %v485
          %v487 = vmul.f32 %v486, %v476
          %v488 = vmul.f32 %v477, %v477
          %v489 = vsub.f32 %v487, %v488
          %v490 = vmax.f32 %v489, 0.0
          %v491 = vadd.f32 %v490, 1e-05
          %v492 = vrsqrt.pop %v491
          %v493 = vmul.f32 %v467, %v492
          %v494 = vmul.f32 %v493, %v477
          %v495 = vsub.f32 %v468, %v494
          %v497 = vlaneseq
          %v498 = vshrl.u32 %v497, 7
          %v499 = vsub.s32 0, %v498
          %v500 = vrot.slane %v493, %v499
          %v502 = vmul.f32 %v461, %v500
          %v503 = vmul.f32 %v464, %v500
          %v505 = vlaneseq
          %v506 = vshrl.u32 %v505, 7
          %v507 = vsub.s32 0, %v506
          %v508 = vrot.slane %v495, %v507
          %v510 = vadd.f32 %v502, %v508
          %v511 = vadd.f32 %v503, %v508
          %v512 = vmax.f32 %v510, 0.0
          %v513 = vmax.f32 %v511, 0.0
          %514 = vst [vmem:[%s329] sm:$0xff] %v512
          %515 = vst [vmem:[%s329 + $0x8] sm:$0xff] %v513
        $region52: #{tpu_custom_call.1} parent=39 // pred_fallthru
          _
        %p516 = scmp.ne.s32.totalorder %s349, 1
        // Predicated region
        $region53: #{tpu_custom_call.1} parent=39 // pred_check
          %p517 = pneg %p516
        $region54: #{tpu_custom_call.1} parent=39 // pred_check_branch
          %519 = sbr.rel (%p517) target = $region56
        $region55: #{tpu_custom_call.1} parent=39 // pred_region
          %v520 = vld [vmem:[%s334] sm:$0xff]
          %v521 = vld [vmem:[%s334 + $0x8] sm:$0xff]
          %522 = vst [vmem:[%s329] sm:$0xff] %v520
          %523 = vst [vmem:[%s329 + $0x8] sm:$0xff] %v521
        $region56: #{tpu_custom_call.1} parent=39 // pred_fallthru
          _
        %s524 = sand.u32 %s184, 1
        %s525 = scalar_lea.sflag [#allocation9], %s524
        %s526 = sand.u32 %s184, 1
        %s527 = smul.addr %s526, 16
        %s528 = scalar_lea.vmem [#allocation12], %s527
        // Predicated region
        $region57: #{tpu_custom_call.1} parent=39 // pred_check
          %p529 = pneg %p194
        $region58: #{tpu_custom_call.1} parent=39 // pred_check_branch
          %531 = sbr.rel (%p529) target = $region60
        $region59: #{tpu_custom_call.1} parent=39 // pred_region
          %s532 = sld [smem:[#allocation6 + %s41]]
          %s534 = ssub.s32 256, 256
          %535 = vsyncadd %s525, %s534
          %s536 = smul.addr %s532, 128
          %s537 = scalar_lea.hbm %s9, %s536
          %s538 = sshll.u32 %s528, 4
          %s539 = int_to_ptr.vmem [resolvable:$true] %s538
          %544 = dma.vmem_to_hbm [thread:$0]  %s539, 256, %s537, %s525, 128, 256, 8
        $region60: #{tpu_custom_call.1} parent=39 // pred_fallthru
          _
      $region40: #{tpu_custom_call.1} parent=5 // pred_fallthru
        _
      %p545 = scmp.le.s32.totalorder 2, %s36
      // Predicated region
      $region61: #{tpu_custom_call.1} parent=5 // pred_check
        %p546 = pneg %p545
      $region62: #{tpu_custom_call.1} parent=5 // pred_check_branch
        %548 = sbr.rel (%p546) target = $region64
      $region63: #{tpu_custom_call.1} parent=5 // pred_region
        %s549 = ssub.s32 %s36, 2
        // Predicated region
        $region65: #{tpu_custom_call.1} parent=63 // pred_check
          %p550 = pneg %p200
        $region66: #{tpu_custom_call.1} parent=63 // pred_check_branch
          %552 = sbr.rel (%p550) target = $region68
        $region67: #{tpu_custom_call.1} parent=63 // pred_region
          %s553 = sand.u32 %s185, 1
          %s554 = scalar_lea.sflag [#allocation9], %s553
          %s555 = sand.u32 %s185, 1
          %s556 = smul.addr %s555, 16
          %s557 = scalar_lea.vmem [#allocation12], %s556
          %558 = dma.done %s554, 256
        $region68: #{tpu_custom_call.1} parent=63 // pred_fallthru
          _
      $region64: #{tpu_custom_call.1} parent=5 // pred_fallthru
        _
    $region6: #{tpu_custom_call.1} parent=1 // loop_footer
      %s40 = sadd.s32 1, %s36
    $region7: #{tpu_custom_call.1} parent=1 // loop_footer_branch
      %35 = sbr.rel target = $region3
    $region8: #{tpu_custom_call.1} parent=1 // loop_exit
      _
    %559 = vsyncpa [#allocation8], 1
    %s560 = scalar_lea.sflag [#allocation8], 1
    %561 = vsyncpa %s560, 1
    %562 = vsyncpa [#allocation11], 1
    %s563 = scalar_lea.sflag [#allocation11], 1
    %564 = vsyncpa %s563, 1
    %565 = vsyncpa [#allocation9], 1
    %s566 = scalar_lea.sflag [#allocation9], 1
    %567 = vsyncpa %s566, 1

</llo_original>
